<compile_context>
chip_gen: v6e
topology: v6e:2x2x1
jax: 0.10.0
libtpu: 0.0.40
codegen_flags: <defaults>
</compile_context>

<pallas_src>
import math

import jax
import jax.numpy as jnp
from jax.experimental import pallas as pl
from jax.experimental.pallas import tpu as pltpu


def _round_up(x, m):
    return ((x + m - 1) // m) * m


def _gcn2_fused_kernel(adj_ref, x_ref, w1_ref, b1_ref, w2_ref, b2_ref,
                       o_ref, h_ref):
    """Fused 2-layer GCN: out = adj @ (relu(adj @ (X@W1) + b1) @ W2) + b2.

    adj/x/w1/w2 are bf16 (MXU inputs), bias/accum/epilogue are f32.
    h_ref is a VMEM f32 scratch holding the hidden activation.
    """
    # ---- Layer 1: support1 = X @ W1 ; h = relu(adj @ support1 + b1) ----
    support1 = jnp.dot(x_ref[...], w1_ref[...],
                       preferred_element_type=jnp.float32)          # MXU
    h = jnp.dot(adj_ref[...], support1.astype(jnp.bfloat16),
                preferred_element_type=jnp.float32)                  # MXU
    h = jnp.maximum(h + b1_ref[...], 0.0)                            # VPU, f32
    h_ref[...] = h                                                   # stays in VMEM

    # Dropout in eval mode is identity.
    # TODO(synk): training-mode dropout (pltpu.prng_random_bits mask) not emitted.

    # ---- Layer 2: support2 = h @ W2 ; out = adj @ support2 + b2 ----
    h_bf16 = h_ref[...].astype(jnp.bfloat16)
    support2 = jnp.dot(h_bf16, w2_ref[...],
                       preferred_element_type=jnp.float32)           # MXU
    out = jnp.dot(adj_ref[...], support2.astype(jnp.bfloat16),
                  preferred_element_type=jnp.float32)                # MXU
    o_ref[...] = (out + b2_ref[...]).astype(o_ref.dtype)             # lane-dense store


@jax.jit
def gcn_model_forward(adj, features, params):
    """GCN_model.forward: GC1 -> ReLU -> Dropout(eval: identity) -> GC2."""
    w1, b1, w2, b2 = params
    n, fin = features.shape
    hid = w1.shape[1]
    fout = w2.shape[1]

    # Pad sublane dim (nodes) to a multiple of 8 and all feature/lane dims to
    # multiples of 128 so loads/stores are lane-dense.  Zero padding is exact:
    # padded adj columns are zero, so padded rows of h never contribute.
    n_p = _round_up(n, 8)
    f_p = _round_up(fin, 128)
    h_p = _round_up(hid, 128)
    o_p = _round_up(fout, 128)

    adj_p = jnp.zeros((n_p, n_p), jnp.float32).at[:n, :n].set(adj).astype(jnp.bfloat16)
    x_p = jnp.zeros((n_p, f_p), jnp.float32).at[:n, :fin].set(features).astype(jnp.bfloat16)
    w1_p = jnp.zeros((f_p, h_p), jnp.float32).at[:fin, :hid].set(w1).astype(jnp.bfloat16)
    b1_p = jnp.zeros((1, h_p), jnp.float32).at[:, :hid].set(b1)
    w2_p = jnp.zeros((h_p, o_p), jnp.float32).at[:hid, :fout].set(w2).astype(jnp.bfloat16)
    b2_p = jnp.zeros((1, o_p), jnp.float32).at[:, :fout].set(b2)

    out_p = pl.pallas_call(
        _gcn2_fused_kernel,
        out_shape=jax.ShapeDtypeStruct((n_p, o_p), jnp.float32),
        in_specs=[
            pl.BlockSpec(memory_space=pltpu.VMEM),  # adj  [Np, Np]  bf16
            pl.BlockSpec(memory_space=pltpu.VMEM),  # x    [Np, Fp]  bf16
            pl.BlockSpec(memory_space=pltpu.VMEM),  # w1   [Fp, Hp]  bf16
            pl.BlockSpec(memory_space=pltpu.VMEM),  # b1   [1,  Hp]  f32
            pl.BlockSpec(memory_space=pltpu.VMEM),  # w2   [Hp, Op]  bf16
            pl.BlockSpec(memory_space=pltpu.VMEM),  # b2   [1,  Op]  f32
        ],
        out_specs=pl.BlockSpec(memory_space=pltpu.VMEM),
        scratch_shapes=[pltpu.VMEM((n_p, h_p), jnp.float32)],  # hidden activation h
        compiler_params=pltpu.CompilerParams(
            vmem_limit_bytes=32 * 1024 * 1024,
        ),
    )(adj_p, x_p, w1_p, b1_p, w2_p, b2_p)

    # Slice the zero padding back off.
    return out_p[:n, :fout]


def init_gcn_params(key, in_feats, n_hidden, out_dims):
    """Deterministic init matching GraphConvolution.reset_parameters:
       uniform(-1/sqrt(out_features), 1/sqrt(out_features))."""
    k1, k2, k3, k4 = jax.random.split(key, 4)
    stdv1 = 1.0 / math.sqrt(n_hidden)
    stdv2 = 1.0 / math.sqrt(out_dims)
    w1 = jax.random.uniform(k1, (in_feats, n_hidden), jnp.float32, -stdv1, stdv1)
    b1 = jax.random.uniform(k2, (1, n_hidden), jnp.float32, -stdv1, stdv1)
    w2 = jax.random.uniform(k3, (n_hidden, out_dims), jnp.float32, -stdv2, stdv2)
    b2 = jax.random.uniform(k4, (1, out_dims), jnp.float32, -stdv2, stdv2)
    return (w1, b1, w2, b2)


def _reference_f32(adj, features, params):
    """Pure f32 reference (matches the PyTorch module semantics)."""
    w1, b1, w2, b2 = params
    h = jnp.maximum(adj @ (features @ w1) + b1, 0.0)
    return adj @ (h @ w2) + b2


def _reference_bf16(adj, features, params):
    """Reference that mimics the kernel's numerics (bf16 MXU inputs, f32 accum)."""
    bf = lambda t: t.astype(jnp.bfloat16).astype(jnp.float32)
    w1, b1, w2, b2 = params
    s1 = bf(features) @ bf(w1)
    h = jnp.maximum(bf(adj) @ bf(s1) + b1, 0.0)
    s2 = bf(h) @ bf(w2)
    return bf(adj) @ bf(s2) + b2


if __name__ == "__main__":
    key = jax.random.PRNGKey(0)
    k_adj, k_feat, k_param = jax.random.split(key, 3)

    N, IN_FEATS, N_HIDDEN, OUT_DIMS = 16, 8, 32, 4

    # Dense, symmetrically normalized random adjacency (with self-loops).
    a = (jax.random.uniform(k_adj, (N, N)) > 0.7).astype(jnp.float32)
    a = jnp.maximum(a, a.T) + jnp.eye(N, dtype=jnp.float32)
    deg = jnp.sum(a, axis=1)
    d_inv_sqrt = 1.0 / jnp.sqrt(deg)
    adj = a * d_inv_sqrt[:, None] * d_inv_sqrt[None, :]

    features = jax.random.normal(k_feat, (N, IN_FEATS), jnp.float32)
    params = init_gcn_params(k_param, IN_FEATS, N_HIDDEN, OUT_DIMS)

    out = gcn_model_forward(adj, features, params)
    out = jax.block_until_ready(out)
    assert out.shape == (N, OUT_DIMS)

    # Tight check against a reference with the same bf16-input numerics.
    ref_bf16 = _reference_bf16(adj, features, params)
    assert jnp.allclose(out, ref_bf16, atol=1e-2, rtol=1e-2), "mismatch vs bf16 reference"

    # Looser check against the pure-f32 module semantics (bf16 quantization noise).
    ref_f32 = _reference_f32(adj, features, params)
    assert jnp.allclose(out, ref_f32, atol=3e-2, rtol=3e-2), "mismatch vs f32 reference"

    print("KERNEL_OK")
</pallas_src>

<mosaic_0001>
module attributes {stable_mosaic.version = 11 : i64} {
  func.func @_gcn2_fused_kernel(%arg0: memref<16x16xbf16, #tpu.memory_space<vmem>>, %arg1: memref<16x128xbf16, #tpu.memory_space<vmem>>, %arg2: memref<128x128xbf16, #tpu.memory_space<vmem>>, %arg3: memref<1x128xf32, #tpu.memory_space<vmem>>, %arg4: memref<128x128xbf16, #tpu.memory_space<vmem>>, %arg5: memref<1x128xf32, #tpu.memory_space<vmem>>, %arg6: memref<16x128xf32, #tpu.memory_space<vmem>>, %arg7: memref<16x128xf32, #tpu.memory_space<vmem>>) attributes {dimension_semantics = [], scalar_prefetch = 0 : i64, scratch_operands = 1 : i64, tpu.core_type = #tpu.core_type<tc>} {
    %c0 = arith.constant 0 : index
    %c0_0 = arith.constant 0 : index
    %0 = vector.load %arg1[%c0, %c0_0] : memref<16x128xbf16, #tpu.memory_space<vmem>>, vector<16x128xbf16>
    %c0_1 = arith.constant 0 : index
    %c0_2 = arith.constant 0 : index
    %1 = vector.load %arg2[%c0_1, %c0_2] : memref<128x128xbf16, #tpu.memory_space<vmem>>, vector<128x128xbf16>
    %cst = arith.constant dense<0.000000e+00> : vector<16x128xf32>
    %2 = tpu.matmul %0, %1, %cst {dimension_numbers = #tpu.dot_dimension_numbers<[1], [0], [0], [1], [0, 0, 1, 1], [], []>} : vector<16x128xbf16>, vector<128x128xbf16>, vector<16x128xf32> -> vector<16x128xf32>
    %c0_3 = arith.constant 0 : index
    %c0_4 = arith.constant 0 : index
    %3 = vector.load %arg0[%c0_3, %c0_4] : memref<16x16xbf16, #tpu.memory_space<vmem>>, vector<16x16xbf16>
    %4 = arith.truncf %2 : vector<16x128xf32> to vector<16x128xbf16>
    %cst_5 = arith.constant dense<0.000000e+00> : vector<16x128xf32>
    %5 = tpu.matmul %3, %4, %cst_5 {dimension_numbers = #tpu.dot_dimension_numbers<[1], [0], [0], [1], [0, 0, 1, 1], [], []>} : vector<16x16xbf16>, vector<16x128xbf16>, vector<16x128xf32> -> vector<16x128xf32>
    %c0_6 = arith.constant 0 : index
    %c0_7 = arith.constant 0 : index
    %6 = vector.load %arg3[%c0_6, %c0_7] : memref<1x128xf32, #tpu.memory_space<vmem>>, vector<1x128xf32>
    %7 = vector.broadcast %6 : vector<1x128xf32> to vector<16x128xf32>
    %8 = arith.addf %5, %7 : vector<16x128xf32>
    %cst_8 = arith.constant 0.000000e+00 : f32
    %9 = vector.broadcast %cst_8 : f32 to vector<16x128xf32>
    %10 = arith.maximumf %8, %9 : vector<16x128xf32>
    %c0_9 = arith.constant 0 : index
    %c0_10 = arith.constant 0 : index
    %11 = vector.load %arg7[%c0_9, %c0_10] : memref<16x128xf32, #tpu.memory_space<vmem>>, vector<16x128xf32>
    tpu.vector_store %arg7[%c0_9, %c0_10], %10 {strides = array<i32>} : memref<16x128xf32, #tpu.memory_space<vmem>>, vector<16x128xf32>,
    %c0_11 = arith.constant 0 : index
    %c0_12 = arith.constant 0 : index
    %12 = vector.load %arg7[%c0_11, %c0_12] : memref<16x128xf32, #tpu.memory_space<vmem>>, vector<16x128xf32>
    %13 = arith.truncf %12 : vector<16x128xf32> to vector<16x128xbf16>
    %c0_13 = arith.constant 0 : index
    %c0_14 = arith.constant 0 : index
    %14 = vector.load %arg4[%c0_13, %c0_14] : memref<128x128xbf16, #tpu.memory_space<vmem>>, vector<128x128xbf16>
    %cst_15 = arith.constant dense<0.000000e+00> : vector<16x128xf32>
    %15 = tpu.matmul %13, %14, %cst_15 {dimension_numbers = #tpu.dot_dimension_numbers<[1], [0], [0], [1], [0, 0, 1, 1], [], []>} : vector<16x128xbf16>, vector<128x128xbf16>, vector<16x128xf32> -> vector<16x128xf32>
    %c0_16 = arith.constant 0 : index
    %c0_17 = arith.constant 0 : index
    %16 = vector.load %arg0[%c0_16, %c0_17] : memref<16x16xbf16, #tpu.memory_space<vmem>>, vector<16x16xbf16>
    %17 = arith.truncf %15 : vector<16x128xf32> to vector<16x128xbf16>
    %cst_18 = arith.constant dense<0.000000e+00> : vector<16x128xf32>
    %18 = tpu.matmul %16, %17, %cst_18 {dimension_numbers = #tpu.dot_dimension_numbers<[1], [0], [0], [1], [0, 0, 1, 1], [], []>} : vector<16x16xbf16>, vector<16x128xbf16>, vector<16x128xf32> -> vector<16x128xf32>
    %c0_19 = arith.constant 0 : index
    %c0_20 = arith.constant 0 : index
    %19 = vector.load %arg5[%c0_19, %c0_20] : memref<1x128xf32, #tpu.memory_space<vmem>>, vector<1x128xf32>
    %20 = vector.broadcast %19 : vector<1x128xf32> to vector<16x128xf32>
    %21 = arith.addf %18, %20 : vector<16x128xf32>
    %c0_21 = arith.constant 0 : index
    %c0_22 = arith.constant 0 : index
    %22 = vector.load %arg6[%c0_21, %c0_22] : memref<16x128xf32, #tpu.memory_space<vmem>>, vector<16x128xf32>
    tpu.vector_store %arg6[%c0_21, %c0_22], %21 {strides = array<i32>} : memref<16x128xf32, #tpu.memory_space<vmem>>, vector<16x128xf32>,
    return
  }
}

</mosaic_0001>

<llo_original>
// kernel: gcn_model_forward.1
$region0: #{gcn_model_forward.1}
  #allocation0 [shape = 'u32[]', space=smem, size = 0x4, offset = 0x4, fixed_abs, tag = 'smem constant byte address 0x4 - core index']
  #allocation1 [shape = 'u32[144,128]{1,0:T(1,128)}', space=vmem, size = 0x12000, scoped, tag = 'internal scratch']
  #allocation2 [shape = 'f32[16,128]{1,0:T(8,128)}', space=vmem, size = 0x2000, scoped, tag = 'scratch operand']
  %s0 = inlined_call_operand.vmem [shape: bf16[16,16], index: 0, kind: input, shape index: {}]
  %s1 = inlined_call_operand.vmem [shape: bf16[16,128], index: 1, kind: input, shape index: {}]
  %s2 = inlined_call_operand.vmem [shape: bf16[128,128], index: 2, kind: input, shape index: {}]
  %s3 = inlined_call_operand.vmem [shape: f32[1,128], index: 3, kind: input, shape index: {}]
  %s4 = inlined_call_operand.vmem [shape: bf16[128,128], index: 4, kind: input, shape index: {}]
  %s5 = inlined_call_operand.vmem [shape: f32[1,128], index: 5, kind: input, shape index: {}]
  %s6 = inlined_call_operand.vmem [shape: f32[16,128], index: 6, kind: output, shape index: {}]
  %s7 = sld [smem:[#allocation0]]
  $region34: #{gcn_model_forward.1} parent=0
    _
  %s9 = ssub.s32 1, %s7
  %s10 = scalar_select 0, %s9, %s7
  // Predicated region
  $region2: #{gcn_model_forward.1} parent=0 // pred_check
    _
  $region3: #{gcn_model_forward.1} parent=0 // pred_check_branch
    %12 = sbr.rel (0) target = $region5
  $region4: #{gcn_model_forward.1} parent=0 // pred_region
    _
  $region5: #{gcn_model_forward.1} parent=0 // pred_fallthru
    _
  // Predicated region
  $region6: #{gcn_model_forward.1} parent=0 // pred_check
    _
  $region7: #{gcn_model_forward.1} parent=0 // pred_check_branch
    %14 = sbr.rel (0) target = $region9
  $region8: #{gcn_model_forward.1} parent=0 // pred_region
    _
  $region9: #{gcn_model_forward.1} parent=0 // pred_fallthru
    _
  // Predicated region
  $region10: #{gcn_model_forward.1} parent=0 // pred_check
    _
  $region11: #{gcn_model_forward.1} parent=0 // pred_check_branch
    %16 = sbr.rel (0) target = $region13
  $region12: #{gcn_model_forward.1} parent=0 // pred_region
    _
  $region13: #{gcn_model_forward.1} parent=0 // pred_fallthru
    _
  // Predicated region
  $region14: #{gcn_model_forward.1} parent=0 // pred_check
    _
  $region15: #{gcn_model_forward.1} parent=0 // pred_check_branch
    %18 = sbr.rel (0) target = $region17
  $region16: #{gcn_model_forward.1} parent=0 // pred_region
    _
  $region17: #{gcn_model_forward.1} parent=0 // pred_fallthru
    _
  // Predicated region
  $region18: #{gcn_model_forward.1} parent=0 // pred_check
    _
  $region19: #{gcn_model_forward.1} parent=0 // pred_check_branch
    %20 = sbr.rel (0) target = $region21
  $region20: #{gcn_model_forward.1} parent=0 // pred_region
    _
  $region21: #{gcn_model_forward.1} parent=0 // pred_fallthru
    _
  // Predicated region
  $region22: #{gcn_model_forward.1} parent=0 // pred_check
    _
  $region23: #{gcn_model_forward.1} parent=0 // pred_check_branch
    %22 = sbr.rel (0) target = $region25
  $region24: #{gcn_model_forward.1} parent=0 // pred_region
    _
  $region25: #{gcn_model_forward.1} parent=0 // pred_fallthru
    _
  %v24 = vld [vmem:[%s1] sm:$0xf]
  %v25 = vld [vmem:[%s1 + $0x4] sm:$0xf]
  %v26 = vld [vmem:[%s2] sm:$0xf]
  %v27 = vld [vmem:[%s2 + $0x4] sm:$0xf]
  %v28 = vld [vmem:[%s2 + $0x8] sm:$0xf]
  %v29 = vld [vmem:[%s2 + $0xc] sm:$0xf]
  %v30 = vld [vmem:[%s2 + $0x10] sm:$0xf]
  %v31 = vld [vmem:[%s2 + $0x14] sm:$0xf]
  %v32 = vld [vmem:[%s2 + $0x18] sm:$0xf]
  %v33 = vld [vmem:[%s2 + $0x1c] sm:$0xf]
  %v34 = vld [vmem:[%s2 + $0x20] sm:$0xf]
  %v35 = vld [vmem:[%s2 + $0x24] sm:$0xf]
  %v36 = vld [vmem:[%s2 + $0x28] sm:$0xf]
  %v37 = vld [vmem:[%s2 + $0x2c] sm:$0xf]
  %v38 = vld [vmem:[%s2 + $0x30] sm:$0xf]
  %v39 = vld [vmem:[%s2 + $0x34] sm:$0xf]
  %v40 = vld [vmem:[%s2 + $0x38] sm:$0xf]
  %v41 = vld [vmem:[%s2 + $0x3c] sm:$0xf]
  %v44 = vunpack.c.l.b16 %v24
  %v45 = vunpack.c.l.b16 %v25
  %v46 = vpack.c.b16 %v45, %v44
  %v64 = vunpack.c.l.b16 %v26
  %v65 = vunpack.c.l.b16 %v27
  %v66 = vunpack.c.l.b16 %v28
  %v67 = vunpack.c.l.b16 %v29
  %v68 = vunpack.c.l.b16 %v30
  %v69 = vunpack.c.l.b16 %v31
  %v70 = vunpack.c.l.b16 %v32
  %v71 = vunpack.c.l.b16 %v33
  %v72 = vunpack.c.l.b16 %v34
  %v73 = vunpack.c.l.b16 %v35
  %v74 = vunpack.c.l.b16 %v36
  %v75 = vunpack.c.l.b16 %v37
  %v76 = vunpack.c.l.b16 %v38
  %v77 = vunpack.c.l.b16 %v39
  %v78 = vunpack.c.l.b16 %v40
  %v79 = vunpack.c.l.b16 %v41
  %v80 = vpack.c.b16 %v65, %v64
  %v81 = vpack.c.b16 %v67, %v66
  %v82 = vpack.c.b16 %v69, %v68
  %v83 = vpack.c.b16 %v71, %v70
  %v84 = vpack.c.b16 %v73, %v72
  %v85 = vpack.c.b16 %v75, %v74
  %v86 = vpack.c.b16 %v77, %v76
  %v87 = vpack.c.b16 %v79, %v78
  %96 = vmatprep.subr.bf16.mxu0 0
  %97 = vmatpush1.bf16.msra.mxu0 %v87
  %98 = vmatprep.subr.bf16.mxu0 0
  %99 = vmatpush1.bf16.msra.mxu0 %v86
  %100 = vmatprep.subr.bf16.mxu0 0
  %101 = vmatpush1.bf16.msra.mxu0 %v85
  %102 = vmatprep.subr.bf16.mxu0 0
  %103 = vmatpush1.bf16.msra.mxu0 %v84
  %104 = vmatprep.subr.bf16.mxu0 0
  %105 = vmatpush1.bf16.msra.mxu0 %v83
  %106 = vmatprep.subr.bf16.mxu0 0
  %107 = vmatpush1.bf16.msra.mxu0 %v82
  %108 = vmatprep.subr.bf16.mxu0 0
  %109 = vmatpush1.bf16.msra.mxu0 %v81
  %110 = vmatprep.subr.bf16.mxu0 0
  %111 = vmatpush1.bf16.msra.mxu0 %v80
  %112 = vmatprep.subr.bf16.mxu0 0
  %113 = vmatpush2.bf16.msra.mxu0 0
  %114 = vmatprep.subr.bf16.mxu0 0
  %115 = vmatpush2.bf16.msra.mxu0 0
  %116 = vmatprep.subr.bf16.mxu0 0
  %117 = vmatpush2.bf16.msra.mxu0 0
  %118 = vmatprep.subr.bf16.mxu0 0
  %119 = vmatpush2.bf16.msra.mxu0 0
  %120 = vmatprep.subr.bf16.mxu0 0
  %121 = vmatpush2.bf16.msra.mxu0 0
  %122 = vmatprep.subr.bf16.mxu0 0
  %123 = vmatpush2.bf16.msra.mxu0 0
  %124 = vmatprep.subr.bf16.mxu0 0
  %125 = vmatpush2.bf16.msra.mxu0 0
  %126 = vmatprep.subr.bf16.mxu0 0
  %127 = vmatpush2.bf16.msra.mxu0 0
  %128 = vmatprep.mubr.bf16.mxu0 0
  %129 = vmatmul.mubr.bf16.gmra.mxu0 %v46
  %v130 = vpop.f32.mrf.mxu0
  %v131 = vadd.f32 0.0, %v130
  %v132 = vpop.f32.mrf.mxu0
  %v133 = vpop.f32.mrf.mxu0
  %v134 = vadd.f32 0.0, %v133
  %v135 = vpop.f32.mrf.mxu0
  %136 = vdwg.mxu0
  %v137 = vld [vmem:[%s0] sm:$0xf]
  %v138 = vld [vmem:[%s0 + $0x4] sm:$0xf]
  %v139 = vpack.c.bf16 %v134, %v131
  %v140 = vld [vmem:[%s3] sm:$0x1]
  %v142 = vlaneseq
  %v143 = vshrl.u32 %v142, 7
  %v144 = vsub.s32 0, %v143
  %v145 = vrot.slane %v140, %v144
  %v149 = vunpack.c.l.b16 %v137
  %v150 = vunpack.c.l.b16 %v138
  %v151 = vpack.c.b16 %v150, %v149
  %vm152 = vcmask 130048
  %v154 = vsel %vm152, %v151, 0
  %156 = vmatprep.subr.bf16.mxu0 0
  %157 = vmatpush1.bf16.msra.mxu0 0
  %158 = vmatprep.subr.bf16.mxu0 0
  %159 = vmatpush1.bf16.msra.mxu0 0
  %160 = vmatprep.subr.bf16.mxu0 0
  %161 = vmatpush1.bf16.msra.mxu0 0
  %162 = vmatprep.subr.bf16.mxu0 0
  %163 = vmatpush1.bf16.msra.mxu0 0
  %164 = vmatprep.subr.bf16.mxu0 0
  %165 = vmatpush1.bf16.msra.mxu0 0
  %166 = vmatprep.subr.bf16.mxu0 0
  %167 = vmatpush1.bf16.msra.mxu0 0
  %168 = vmatprep.subr.bf16.mxu0 0
  %169 = vmatpush1.bf16.msra.mxu0 0
  %170 = vmatprep.subr.bf16.mxu0 0
  %171 = vmatpush1.bf16.msra.mxu0 %v139
  %172 = vmatprep.subr.bf16.mxu0 0
  %173 = vmatpush2.bf16.msra.mxu0 0
  %174 = vmatprep.subr.bf16.mxu0 0
  %175 = vmatpush2.bf16.msra.mxu0 0
  %176 = vmatprep.subr.bf16.mxu0 0
  %177 = vmatpush2.bf16.msra.mxu0 0
  %178 = vmatprep.subr.bf16.mxu0 0
  %179 = vmatpush2.bf16.msra.mxu0 0
  %180 = vmatprep.subr.bf16.mxu0 0
  %181 = vmatpush2.bf16.msra.mxu0 0
  %182 = vmatprep.subr.bf16.mxu0 0
  %183 = vmatpush2.bf16.msra.mxu0 0
  %184 = vmatprep.subr.bf16.mxu0 0
  %185 = vmatpush2.bf16.msra.mxu0 0
  %186 = vmatprep.subr.bf16.mxu0 0
  %187 = vmatpush2.bf16.msra.mxu0 0
  %188 = vmatprep.mubr.bf16.mxu0 0
  %189 = vmatmul.mubr.bf16.gmra.mxu0 %v154
  %v190 = vpop.f32.mrf.mxu0
  %v191 = vadd.f32 %v145, %v190
  %v192 = vpop.f32.mrf.mxu0
  %v193 = vpop.f32.mrf.mxu0
  %v194 = vadd.f32 %v145, %v193
  %v195 = vpop.f32.mrf.mxu0
  %196 = vdwg.mxu0
  %v197 = vmax.f32 %v191, 0.0
  %v198 = vmax.f32 %v194, 0.0
  %199 = vst [vmem:[#allocation2] sm:$0xff] %v197
  %200 = vst [vmem:[#allocation2 + $0x8] sm:$0xff] %v198
  %v201 = vld [vmem:[#allocation2] sm:$0xff]
  %v202 = vld [vmem:[#allocation2 + $0x8] sm:$0xff]
  %v203 = vpack.c.bf16 %v202, %v201
  %v204 = vld [vmem:[%s4] sm:$0xf]
  %v205 = vld [vmem:[%s4 + $0x4] sm:$0xf]
  %v206 = vld [vmem:[%s4 + $0x8] sm:$0xf]
  %v207 = vld [vmem:[%s4 + $0xc] sm:$0xf]
  %v208 = vld [vmem:[%s4 + $0x10] sm:$0xf]
  %v209 = vld [vmem:[%s4 + $0x14] sm:$0xf]
  %v210 = vld [vmem:[%s4 + $0x18] sm:$0xf]
  %v211 = vld [vmem:[%s4 + $0x1c] sm:$0xf]
  %v212 = vld [vmem:[%s4 + $0x20] sm:$0xf]
  %v213 = vld [vmem:[%s4 + $0x24] sm:$0xf]
  %v214 = vld [vmem:[%s4 + $0x28] sm:$0xf]
  %v215 = vld [vmem:[%s4 + $0x2c] sm:$0xf]
  %v216 = vld [vmem:[%s4 + $0x30] sm:$0xf]
  %v217 = vld [vmem:[%s4 + $0x34] sm:$0xf]
  %v218 = vld [vmem:[%s4 + $0x38] sm:$0xf]
  %v219 = vld [vmem:[%s4 + $0x3c] sm:$0xf]
  %v236 = vunpack.c.l.b16 %v204
  %v237 = vunpack.c.l.b16 %v205
  %v238 = vunpack.c.l.b16 %v206
  %v239 = vunpack.c.l.b16 %v207
  %v240 = vunpack.c.l.b16 %v208
  %v241 = vunpack.c.l.b16 %v209
  %v242 = vunpack.c.l.b16 %v210
  %v243 = vunpack.c.l.b16 %v211
  %v244 = vunpack.c.l.b16 %v212
  %v245 = vunpack.c.l.b16 %v213
  %v246 = vunpack.c.l.b16 %v214
  %v247 = vunpack.c.l.b16 %v215
  %v248 = vunpack.c.l.b16 %v216
  %v249 = vunpack.c.l.b16 %v217
  %v250 = vunpack.c.l.b16 %v218
  %v251 = vunpack.c.l.b16 %v219
  %v252 = vpack.c.b16 %v237, %v236
  %v253 = vpack.c.b16 %v239, %v238
  %v254 = vpack.c.b16 %v241, %v240
  %v255 = vpack.c.b16 %v243, %v242
  %v256 = vpack.c.b16 %v245, %v244
  %v257 = vpack.c.b16 %v247, %v246
  %v258 = vpack.c.b16 %v249, %v248
  %v259 = vpack.c.b16 %v251, %v250
  %268 = vmatprep.subr.bf16.mxu0 0
  %269 = vmatpush1.bf16.msra.mxu0 %v259
  %270 = vmatprep.subr.bf16.mxu0 0
  %271 = vmatpush1.bf16.msra.mxu0 %v258
  %272 = vmatprep.subr.bf16.mxu0 0
  %273 = vmatpush1.bf16.msra.mxu0 %v257
  %274 = vmatprep.subr.bf16.mxu0 0
  %275 = vmatpush1.bf16.msra.mxu0 %v256
  %276 = vmatprep.subr.bf16.mxu0 0
  %277 = vmatpush1.bf16.msra.mxu0 %v255
  %278 = vmatprep.subr.bf16.mxu0 0
  %279 = vmatpush1.bf16.msra.mxu0 %v254
  %280 = vmatprep.subr.bf16.mxu0 0
  %281 = vmatpush1.bf16.msra.mxu0 %v253
  %282 = vmatprep.subr.bf16.mxu0 0
  %283 = vmatpush1.bf16.msra.mxu0 %v252
  %284 = vmatprep.subr.bf16.mxu0 0
  %285 = vmatpush2.bf16.msra.mxu0 0
  %286 = vmatprep.subr.bf16.mxu0 0
  %287 = vmatpush2.bf16.msra.mxu0 0
  %288 = vmatprep.subr.bf16.mxu0 0
  %289 = vmatpush2.bf16.msra.mxu0 0
  %290 = vmatprep.subr.bf16.mxu0 0
  %291 = vmatpush2.bf16.msra.mxu0 0
  %292 = vmatprep.subr.bf16.mxu0 0
  %293 = vmatpush2.bf16.msra.mxu0 0
  %294 = vmatprep.subr.bf16.mxu0 0
  %295 = vmatpush2.bf16.msra.mxu0 0
  %296 = vmatprep.subr.bf16.mxu0 0
  %297 = vmatpush2.bf16.msra.mxu0 0
  %298 = vmatprep.subr.bf16.mxu0 0
  %299 = vmatpush2.bf16.msra.mxu0 0
  %300 = vmatprep.mubr.bf16.mxu0 0
  %301 = vmatmul.mubr.bf16.gmra.mxu0 %v203
  %v302 = vpop.f32.mrf.mxu0
  %v303 = vadd.f32 0.0, %v302
  %v304 = vpop.f32.mrf.mxu0
  %v305 = vpop.f32.mrf.mxu0
  %v306 = vadd.f32 0.0, %v305
  %v307 = vpop.f32.mrf.mxu0
  %308 = vdwg.mxu0
  %v309 = vld [vmem:[%s0] sm:$0xf]
  %v310 = vld [vmem:[%s0 + $0x4] sm:$0xf]
  %v311 = vpack.c.bf16 %v306, %v303
  %v312 = vld [vmem:[%s5] sm:$0x1]
  %v314 = vlaneseq
  %v315 = vshrl.u32 %v314, 7
  %v316 = vsub.s32 0, %v315
  %v317 = vrot.slane %v312, %v316
  %v321 = vunpack.c.l.b16 %v309
  %v322 = vunpack.c.l.b16 %v310
  %v323 = vpack.c.b16 %v322, %v321
  %v325 = vsel %vm152, %v323, 0
  %327 = vmatprep.subr.bf16.mxu0 0
  %328 = vmatpush1.bf16.msra.mxu0 0
  %329 = vmatprep.subr.bf16.mxu0 0
  %330 = vmatpush1.bf16.msra.mxu0 0
  %331 = vmatprep.subr.bf16.mxu0 0
  %332 = vmatpush1.bf16.msra.mxu0 0
  %333 = vmatprep.subr.bf16.mxu0 0
  %334 = vmatpush1.bf16.msra.mxu0 0
  %335 = vmatprep.subr.bf16.mxu0 0
  %336 = vmatpush1.bf16.msra.mxu0 0
  %337 = vmatprep.subr.bf16.mxu0 0
  %338 = vmatpush1.bf16.msra.mxu0 0
  %339 = vmatprep.subr.bf16.mxu0 0
  %340 = vmatpush1.bf16.msra.mxu0 0
  %341 = vmatprep.subr.bf16.mxu0 0
  %342 = vmatpush1.bf16.msra.mxu0 %v311
  %343 = vmatprep.subr.bf16.mxu0 0
  %344 = vmatpush2.bf16.msra.mxu0 0
  %345 = vmatprep.subr.bf16.mxu0 0
  %346 = vmatpush2.bf16.msra.mxu0 0
  %347 = vmatprep.subr.bf16.mxu0 0
  %348 = vmatpush2.bf16.msra.mxu0 0
  %349 = vmatprep.subr.bf16.mxu0 0
  %350 = vmatpush2.bf16.msra.mxu0 0
  %351 = vmatprep.subr.bf16.mxu0 0
  %352 = vmatpush2.bf16.msra.mxu0 0
  %353 = vmatprep.subr.bf16.mxu0 0
  %354 = vmatpush2.bf16.msra.mxu0 0
  %355 = vmatprep.subr.bf16.mxu0 0
  %356 = vmatpush2.bf16.msra.mxu0 0
  %357 = vmatprep.subr.bf16.mxu0 0
  %358 = vmatpush2.bf16.msra.mxu0 0
  %359 = vmatprep.mubr.bf16.mxu0 0
  %360 = vmatmul.mubr.bf16.gmra.mxu0 %v325
  %v361 = vpop.f32.mrf.mxu0
  %v362 = vadd.f32 %v317, %v361
  %v363 = vpop.f32.mrf.mxu0
  %v364 = vpop.f32.mrf.mxu0
  %v365 = vadd.f32 %v317, %v364
  %v366 = vpop.f32.mrf.mxu0
  %367 = vdwg.mxu0
  %368 = vst [vmem:[%s6] sm:$0xff] %v362
  %369 = vst [vmem:[%s6 + $0x8] sm:$0xff] %v365
  // Predicated region
  $region26: #{gcn_model_forward.1} parent=0 // pred_check
    _
  $region27: #{gcn_model_forward.1} parent=0 // pred_check_branch
    %371 = sbr.rel (0) target = $region29
  $region28: #{gcn_model_forward.1} parent=0 // pred_region
    _
  $region29: #{gcn_model_forward.1} parent=0 // pred_fallthru
    _
  // Predicated region
  $region30: #{gcn_model_forward.1} parent=0 // pred_check
    _
  $region31: #{gcn_model_forward.1} parent=0 // pred_check_branch
    %373 = sbr.rel (0) target = $region33
  $region32: #{gcn_model_forward.1} parent=0 // pred_region
    _
  $region33: #{gcn_model_forward.1} parent=0 // pred_fallthru
    _

</llo_original>
